<compile_context>
chip_gen: v5e
topology: v5e:2x2
jax: 0.10.0
libtpu: 0.0.40
codegen_flags: <defaults>
</compile_context>

<pallas_src>
import functools

import jax
import jax.numpy as jnp
from jax.experimental import pallas as pl
from jax.experimental.pallas import tpu as pltpu


_MIB = 1024 * 1024
_MATMUL_MAX_L = 1024            # band-matrix MXU path for L up to this (review-suggested)
_FALLBACK_UNROLL_MAX_K = 25     # fallback: exact unrolled window sum up to this k


def _vmem_limit_bytes():
    """Generation-aware scoped-VMEM limit: ~100 MiB on 128-MiB parts (v5e/v6e),
    ~40 MiB on 64-MiB parts (v7x)."""
    cap = 64 * _MIB  # conservative default if the query is unavailable
    try:
        info = pltpu.get_tpu_info()
        cap = int(getattr(info, "vmem_capacity_bytes", cap)) or cap
    except Exception:
        pass
    return int(max(min(cap - 24 * _MIB, cap * 0.80), 24 * _MIB))


def _band_matrix(L, kernel_size):
    """A[t, j] = number of taps of the replicate-padded length-k window centred at t
    that read x[j]; moving_mean = (A @ x) * (1/k).  Integer-valued f32 -> exact."""
    pad = (kernel_size - 1) // 2
    t = jnp.arange(L, dtype=jnp.int32)[:, None]
    j = jnp.arange(L, dtype=jnp.int32)[None, :]
    a = (jnp.abs(t - j) <= pad).astype(jnp.float32)
    left = jnp.maximum(pad - t[:, 0], 0).astype(jnp.float32)             # taps clamped to row 0
    right = jnp.maximum(t[:, 0] + pad - (L - 1), 0).astype(jnp.float32)  # taps clamped to row L-1
    a = a.at[:, 0].add(left)
    a = a.at[:, L - 1].add(right)
    return a


# ---------------------------------------------------------------------------
# Primary kernel: MXU band-matrix moving average.
# ---------------------------------------------------------------------------
def _decomp_matmul_kernel(a_ref, x_ref, res_ref, mean_ref, *, kernel_size):
    inv_k = 1.0 / kernel_size
    a = a_ref[...]                                   # (L, L) f32, VMEM-resident
    for b in range(x_ref.shape[0]):                  # static unroll over the batch tile
        xb = x_ref[b].astype(jnp.float32)            # (L, Ct)
        win = jnp.dot(a, xb, preferred_element_type=jnp.float32)   # MXU
        mean = win * inv_k
        mean_ref[b] = mean.astype(mean_ref.dtype)
        res_ref[b] = (xb - mean).astype(res_ref.dtype)


# ---------------------------------------------------------------------------
# Fallback kernel (very long L): roll+select shifts, no concatenate temps.
# ---------------------------------------------------------------------------
def _window_sum_roll(xf, kernel_size):
    """Replicate-padded sliding-window sum along axis 0 of an (L, W) f32 tile using
    XLU rotates + VALU selects (no jnp.concatenate -> no extra full-tile vst pass)."""
    L, W = xf.shape
    pad = (kernel_size - 1) // 2
    if pad == 0:
        return xf
    row = jax.lax.broadcasted_iota(jnp.int32, (L, W), 0)
    first = xf[0:1, :]
    last = xf[L - 1:L, :]

    def shift_down(v, j, fill):        # y[t] = v[t-j] for t >= j, else fill
        if j == 0:
            return v
        if j >= L:
            return jnp.broadcast_to(fill, (L, W))
        r = pltpu.roll(v, shift=j, axis=0)
        return jnp.where(row < j, fill, r)

    def shift_up(v, j, fill):          # y[t] = v[t+j] for t <= L-1-j, else fill
        if j == 0:
            return v
        if j >= L:
            return jnp.broadcast_to(fill, (L, W))
        r = pltpu.roll(v, shift=L - j, axis=0)       # rotate by L-j == shift by -j
        return jnp.where(row > (L - 1) - j, fill, r)

    if kernel_size <= _FALLBACK_UNROLL_MAX_K:
        acc = xf                                     # centre tap seeds the accumulator
        for j in range(1, pad + 1):
            acc = acc + shift_up(xf, j, last) + shift_down(xf, j, first)
        return acc

    # Very large windows: inclusive prefix sum (Hillis-Steele) + windowed difference.
    # TODO(synk): f32 cancellation grows ~O(L*eps*|x|) here; acceptable only for this
    # rare (very long L, very large k) fallback — the matmul path is exact.
    zero = jnp.zeros((1, W), jnp.float32)
    csum = xf
    s = 1
    while s < L:
        csum = csum + shift_down(csum, s, zero)
        s *= 2
    total = csum[L - 1:L, :]
    hi = shift_up(csum, pad, total)                  # csum[min(t+pad, L-1)]
    lo = shift_down(csum, pad + 1, zero)             # csum[t-pad-1] (0 for t <= pad)
    left_cnt = jnp.maximum(pad - row, 0).astype(jnp.float32)
    right_cnt = jnp.maximum(row + pad - (L - 1), 0).astype(jnp.float32)
    return (hi - lo) + left_cnt * first + right_cnt * last


def _decomp_roll_kernel(x_ref, res_ref, mean_ref, *, kernel_size):
    inv_k = 1.0 / kernel_size
    for b in range(x_ref.shape[0]):
        xb = x_ref[b].astype(jnp.float32)
        mean = _window_sum_roll(xb, kernel_size) * inv_k
        mean_ref[b] = mean.astype(mean_ref.dtype)
        res_ref[b] = (xb - mean).astype(res_ref.dtype)


# ---------------------------------------------------------------------------
# Tiling / wrapper.
# ---------------------------------------------------------------------------
def _pick_tiles(B, L, C, elt_bytes, budget_bytes, f32_temps):
    """Pick (bt, ct): batch rows and channel lanes per grid step such that the
    pipeline buffers (2x input + 2x2 outputs) plus in-kernel f32 temps fit the
    budget.  ct is the lane axis: full C when C <= 128, else a multiple of 128."""
    def cost(bt, ct):
        pipeline = 6 * bt * L * ct * elt_bytes       # double-buffered in/out blocks
        temps = f32_temps * L * ct * 4               # live f32 temps inside the kernel
        return pipeline + temps

    if C <= 128:
        ct = C
    else:
        ct = C if C % 128 == 0 else (C // 128) * 128
        while ct > 128 and cost(1, ct) > budget_bytes:
            ct -= 128

    bt = 1
    while bt < min(B, 16) and cost(bt + 1, ct) <= budget_bytes:
        bt += 1

    # v7x has two TensorCores; keep at least two grid steps when the batch allows it.
    if B > 1 and pl.cdiv(B, bt) * pl.cdiv(C, ct) < 2:
        bt = pl.cdiv(B, 2)
    return bt, ct


def series_decomp(x, kernel_size):
    """Pallas-TPU moving-average series decomposition.

    x: (B, L, C) -> (res, moving_mean), both (B, L, C), matching the PyTorch module
    (replicate padding of (k-1)//2 on both ends of the time axis, stride 1).
    """
    if kernel_size % 2 != 1:
        # TODO(synk): even k in the PyTorch module yields a length-(L-1) mean and the
        # subsequent `x - moving_mean` broadcast fails; only odd k is meaningful here.
        raise ValueError("series_decomp requires an odd kernel_size.")
    B, L, C = x.shape
    elt = jnp.dtype(x.dtype).itemsize
    vmem_limit = _vmem_limit_bytes()
    a_bytes = L * L * 4

    out_shape = (jax.ShapeDtypeStruct((B, L, C), x.dtype),
                 jax.ShapeDtypeStruct((B, L, C), x.dtype))
    compiler_params = pltpu.CompilerParams(
        dimension_semantics=("parallel", "parallel"),
        vmem_limit_bytes=vmem_limit)

    use_matmul = (L <= _MATMUL_MAX_L) and (2 * a_bytes <= vmem_limit // 3)

    if use_matmul:
        budget = max(int(vmem_limit * 0.6) - 3 * a_bytes, 2 * _MIB)
        bt, ct = _pick_tiles(B, L, C, elt, budget, f32_temps=8)
        a_mat = _band_matrix(L, kernel_size)
        kern = functools.partial(_decomp_matmul_kernel, kernel_size=kernel_size)
        res, mean = pl.pallas_call(
            kern,
            out_shape=out_shape,
            grid=(pl.cdiv(B, bt), pl.cdiv(C, ct)),
            in_specs=[pl.BlockSpec((L, L), lambda bi, ci: (0, 0)),          # VMEM-resident
                      pl.BlockSpec((bt, L, ct), lambda bi, ci: (bi, 0, ci))],
            out_specs=(pl.BlockSpec((bt, L, ct), lambda bi, ci: (bi, 0, ci)),
                       pl.BlockSpec((bt, L, ct), lambda bi, ci: (bi, 0, ci))),
            compiler_params=compiler_params,
        )(a_mat, x)
        return res, mean

    # Fallback for sequences too long for a VMEM-resident (L, L) band matrix.
    budget = max(int(vmem_limit * 0.6), 2 * _MIB)
    bt, ct = _pick_tiles(B, L, C, elt, budget, f32_temps=12)
    kern = functools.partial(_decomp_roll_kernel, kernel_size=kernel_size)
    res, mean = pl.pallas_call(
        kern,
        out_shape=out_shape,
        grid=(pl.cdiv(B, bt), pl.cdiv(C, ct)),
        in_specs=[pl.BlockSpec((bt, L, ct), lambda bi, ci: (bi, 0, ci))],
        out_specs=(pl.BlockSpec((bt, L, ct), lambda bi, ci: (bi, 0, ci)),
                   pl.BlockSpec((bt, L, ct), lambda bi, ci: (bi, 0, ci))),
        compiler_params=compiler_params,
    )(x)
    return res, mean


# ---------------------------------------------------------------------------
# Pure-JAX reference mirroring the PyTorch forward, and tests.
# ---------------------------------------------------------------------------
def _reference(x, kernel_size):
    pad = (kernel_size - 1) // 2
    front = jnp.repeat(x[:, 0:1, :], pad, axis=1)
    end = jnp.repeat(x[:, -1:, :], pad, axis=1)
    xp = jnp.concatenate([front, x, end], axis=1)
    L = x.shape[1]
    windows = jnp.stack([xp[:, j:j + L, :] for j in range(kernel_size)], axis=0)
    mean = jnp.mean(windows, axis=0)
    return x - mean, mean


def _check(x, kernel_size):
    res, mean = series_decomp(x, kernel_size)
    jax.block_until_ready((res, mean))
    res_r, mean_r = _reference(x, kernel_size)
    assert jnp.allclose(mean, mean_r, atol=1e-5, rtol=1e-5), f"mean mismatch k={kernel_size}"
    assert jnp.allclose(res, res_r, atol=1e-5, rtol=1e-5), f"res mismatch k={kernel_size}"


if __name__ == "__main__":
    key = jax.random.PRNGKey(0)

    # Primary small-shape test: (batch, seq_len, channels) = (2, 16, 4).
    x = jax.random.normal(key, (2, 16, 4), dtype=jnp.float32)
    for ks in (1, 5, 25):          # identity window, small window, heavily clamped window
        _check(x, ks)

    # Partial batch block (B=3 with bt=2) exercises masked writeback of edge blocks.
    x3 = jax.random.normal(jax.random.PRNGKey(0), (3, 16, 4), dtype=jnp.float32)
    _check(x3, 5)

    # Wide-channel (lane-tiled, C >= 128) case.
    xw = jax.random.normal(jax.random.PRNGKey(0), (2, 16, 256), dtype=jnp.float32)
    _check(xw, 5)

    print("KERNEL_OK")
</pallas_src>

<mosaic_0001>
module attributes {stable_mosaic.version = 11 : i64} {
  func.func @_decomp_matmul_kernel(%arg0: i32, %arg1: i32, %arg2: memref<16x16xf32, #tpu.memory_space<vmem>>, %arg3: memref<1x16x4xf32, #tpu.memory_space<vmem>>, %arg4: memref<1x16x4xf32, #tpu.memory_space<vmem>>, %arg5: memref<1x16x4xf32, #tpu.memory_space<vmem>>) attributes {dimension_semantics = [#tpu.dimension_semantics<parallel>, #tpu.dimension_semantics<parallel>], iteration_bounds = array<i64: 2, 1>, scalar_prefetch = 0 : i64, scratch_operands = 0 : i64, tpu.core_type = #tpu.core_type<tc>, window_params = [{pipeline_mode = #tpu.pipeline_mode<synchronous>, transform_indices = @transform_0, window_bounds = array<i64: 16, 16>}, {transform_indices = @transform_1, window_bounds = array<i64: 1, 16, 4>}, {transform_indices = @transform_2, window_bounds = array<i64: 1, 16, 4>}, {transform_indices = @transform_3, window_bounds = array<i64: 1, 16, 4>}]} {
    %c0 = arith.constant 0 : index
    %c0_0 = arith.constant 0 : index
    %0 = vector.load %arg2[%c0, %c0_0] : memref<16x16xf32, #tpu.memory_space<vmem>>, vector<16x16xf32>
    %c0_1 = arith.constant 0 : index
    %c0_2 = arith.constant 0 : index
    %c0_3 = arith.constant 0 : index
    %1 = vector.load %arg3[%c0_1, %c0_2, %c0_3] : memref<1x16x4xf32, #tpu.memory_space<vmem>>, vector<1x16x4xf32>
    %2 = vector.shape_cast %1 : vector<1x16x4xf32> to vector<16x4xf32>
    %cst = arith.constant dense<0.000000e+00> : vector<16x4xf32>
    %3 = tpu.matmul %0, %2, %cst {dimension_numbers = #tpu.dot_dimension_numbers<[1], [0], [0], [1], [0, 0, 1, 1], [], []>} : vector<16x16xf32>, vector<16x4xf32>, vector<16x4xf32> -> vector<16x4xf32>
    %cst_4 = arith.constant 1.000000e+00 : f32
    %4 = vector.broadcast %cst_4 : f32 to vector<16x4xf32>
    %5 = arith.mulf %3, %4 : vector<16x4xf32>
    %c0_5 = arith.constant 0 : index
    %c0_6 = arith.constant 0 : index
    %c0_7 = arith.constant 0 : index
    %6 = vector.load %arg5[%c0_5, %c0_6, %c0_7] : memref<1x16x4xf32, #tpu.memory_space<vmem>>, vector<1x16x4xf32>
    %7 = vector.shape_cast %6 : vector<1x16x4xf32> to vector<16x4xf32>
    %8 = vector.shape_cast %5 : vector<16x4xf32> to vector<1x16x4xf32>
    tpu.vector_store %arg5[%c0_5, %c0_6, %c0_7], %8 {strides = array<i32>} : memref<1x16x4xf32, #tpu.memory_space<vmem>>, vector<1x16x4xf32>,
    %9 = arith.subf %2, %5 : vector<16x4xf32>
    %c0_8 = arith.constant 0 : index
    %c0_9 = arith.constant 0 : index
    %c0_10 = arith.constant 0 : index
    %10 = vector.load %arg4[%c0_8, %c0_9, %c0_10] : memref<1x16x4xf32, #tpu.memory_space<vmem>>, vector<1x16x4xf32>
    %11 = vector.shape_cast %10 : vector<1x16x4xf32> to vector<16x4xf32>
    %12 = vector.shape_cast %9 : vector<16x4xf32> to vector<1x16x4xf32>
    tpu.vector_store %arg4[%c0_8, %c0_9, %c0_10], %12 {strides = array<i32>} : memref<1x16x4xf32, #tpu.memory_space<vmem>>, vector<1x16x4xf32>,
    return
  }
  func.func @transform_0(%arg0: i32, %arg1: i32) -> (i32, i32) {
    %c0_i32 = arith.constant 0 : i32
    %c0_i32_0 = arith.constant 0 : i32
    %c0_i32_1 = arith.constant 0 : i32
    return %c0_i32, %c0_i32_0 : i32, i32
  }
  func.func @transform_1(%arg0: i32, %arg1: i32) -> (i32, i32, i32) {
    %c0_i32 = arith.constant 0 : i32
    %c0_i32_0 = arith.constant 0 : i32
    return %arg0, %c0_i32, %arg1 : i32, i32, i32
  }
  func.func @transform_2(%arg0: i32, %arg1: i32) -> (i32, i32, i32) {
    %c0_i32 = arith.constant 0 : i32
    %c0_i32_0 = arith.constant 0 : i32
    return %arg0, %c0_i32, %arg1 : i32, i32, i32
  }
  func.func @transform_3(%arg0: i32, %arg1: i32) -> (i32, i32, i32) {
    %c0_i32 = arith.constant 0 : i32
    %c0_i32_0 = arith.constant 0 : i32
    return %arg0, %c0_i32, %arg1 : i32, i32, i32
  }
}

</mosaic_0001>

<llo_original>
// kernel: tpu_custom_call.1
$region0: #{tpu_custom_call.1}
  #allocation0 [shape = 'u32[]', space=smem, size = 0x4, offset = 0x4, fixed_abs, tag = 'smem constant byte address 0x4 - core index']
  #allocation1 [shape = 'u32[72,128]{1,0:T(1,128)}', space=vmem, size = 0x9000, scoped, tag = 'internal scratch']
  %s0 = inlined_call_operand.vmem [shape: f32[16,16], index: 0, kind: input, shape index: {}]
  %s1 = inlined_call_operand.vmem [shape: f32[2,16,4], index: 1, kind: input, shape index: {}]
  %s2 = inlined_call_operand.vmem [shape: f32[2,16,4], index: 2, kind: output, shape index: {0}]
  %s3 = inlined_call_operand.vmem [shape: f32[2,16,4], index: 3, kind: output, shape index: {1}]
  %4 = xla_tuple %s2, %s3
  %s5 = sld [smem:[#allocation0]]
  $region49: #{tpu_custom_call.1} parent=0
    _
  %s7 = ssub.s32 1, %s5
  %s8 = scalar_select 0, %s7, %s5
  loop: start=0, step=1, limit=4
  $region2: #{tpu_custom_call.1} parent=0 // loop_pre_header
    _
  $region3: #{tpu_custom_call.1} parent=0 // loop_header
    %s10 = sphi 0, %s14
    %p11 = scmp.ge.s32.totalorder %s10, 4
    %s17 = sphi 0, %s29
    %s18 = sphi 0, %s25
    %s19 = sphi 0, %s17
    %s20 = sphi 0, %s18
    %s21 = sphi 0, %s19
    %s22 = sphi 0, %s20
    %s30 = sphi 0, %s30
    %s32 = sphi 0, %s30
    %s33 = sphi 0, %s32
    %s47 = sphi 0, %s33
    %s55 = sphi 0, %s57
    %s58 = sphi 0, %s55
    %s59 = sphi 0, %s58
    %s75 = sphi 0, %s59
    %s83 = sphi 0, %s85
    %s86 = sphi 0, %s83
    %s87 = sphi 0, %s86
    %s103 = sphi 0, %s87
    %s111 = sphi 0, %s113
    %s114 = sphi 0, %s111
    %s115 = sphi 0, %s114
    %s131 = sphi 0, %s115
  $region4: #{tpu_custom_call.1} parent=0 // loop_header_branch
    %13 = sbr.rel (%p11) target = $region8
  $region5: #{tpu_custom_call.1} parent=0 // loop_body
    %s15 = ssub.s32 %s10, 1
    %s16 = ssub.s32 %s10, 2
    %s23 = sadd.s32 1, %s18
    %p24 = scmp.ge.s32.totalorder %s23, 1
    %s25 = scalar_select %p24, 0, %s23
    %s26 = sadd.s32 1, %s17
    %s27 = scalar_select %p24, %s26, %s17
    %p28 = scmp.ge.s32.totalorder %s27, 2
    %s29 = scalar_select %p28, 0, %s27
    %s31 = sadd.s32 %s30, 1
    %p34 = scmp.eq.s32.totalorder %s10, 1
    %p35 = scmp.ne.s32.totalorder %s30, %s32
    %p36 = scmp.eq.s32.totalorder %s10, 0
    %p37 = por %p35, %p36
    %p38 = scmp.ne.s32.totalorder %s30, %s32
    %p39 = scmp.eq.s32.totalorder %s15, 1
    %p40 = por %p38, %p39
    %p41 = scmp.ne.s32.totalorder %s32, %s33
    %p42 = scmp.eq.s32.totalorder %s15, 0
    %p43 = por %p41, %p42
    %p44 = scmp.ne.s32.totalorder %s32, %s33
    %p45 = scmp.eq.s32.totalorder %s16, 1
    %p46 = por %p44, %p45
    %p48 = scmp.ne.s32.totalorder %s33, %s47
    %p49 = scmp.eq.s32.totalorder %s16, 0
    %p50 = por %p48, %p49
    %s51 = ssub.s32 %s17, %s29
    %s52 = ssub.s32 %s18, %s25
    %s53 = sor.u32 %s51, %s52
    %p54 = scmp.eq.s32.totalorder %s53, 0
    %s56 = sadd.s32 %s55, 1
    %s57 = scalar_select %p54, %s55, %s56
    %p60 = pneg %p54
    %p61 = scmp.eq.s32.totalorder %s10, 1
    %p62 = por %p60, %p61
    %p63 = scmp.ne.s32.totalorder %s55, %s58
    %p64 = scmp.eq.s32.totalorder %s10, 0
    %p65 = por %p63, %p64
    %p66 = scmp.ne.s32.totalorder %s55, %s58
    %p67 = scmp.eq.s32.totalorder %s15, 1
    %p68 = por %p66, %p67
    %p69 = scmp.ne.s32.totalorder %s58, %s59
    %p70 = scmp.eq.s32.totalorder %s15, 0
    %p71 = por %p69, %p70
    %p72 = scmp.ne.s32.totalorder %s58, %s59
    %p73 = scmp.eq.s32.totalorder %s16, 1
    %p74 = por %p72, %p73
    %p76 = scmp.ne.s32.totalorder %s59, %s75
    %p77 = scmp.eq.s32.totalorder %s16, 0
    %p78 = por %p76, %p77
    %s79 = ssub.s32 %s17, %s29
    %s80 = ssub.s32 %s18, %s25
    %s81 = sor.u32 %s79, %s80
    %p82 = scmp.eq.s32.totalorder %s81, 0
    %s84 = sadd.s32 %s83, 1
    %s85 = scalar_select %p82, %s83, %s84
    %p88 = pneg %p82
    %p89 = scmp.eq.s32.totalorder %s10, 1
    %p90 = por %p88, %p89
    %p91 = scmp.ne.s32.totalorder %s83, %s86
    %p92 = scmp.eq.s32.totalorder %s10, 0
    %p93 = por %p91, %p92
    %p94 = scmp.ne.s32.totalorder %s83, %s86
    %p95 = scmp.eq.s32.totalorder %s15, 1
    %p96 = por %p94, %p95
    %p97 = scmp.ne.s32.totalorder %s86, %s87
    %p98 = scmp.eq.s32.totalorder %s15, 0
    %p99 = por %p97, %p98
    %p100 = scmp.ne.s32.totalorder %s86, %s87
    %p101 = scmp.eq.s32.totalorder %s16, 1
    %p102 = por %p100, %p101
    %p104 = scmp.ne.s32.totalorder %s87, %s103
    %p105 = scmp.eq.s32.totalorder %s16, 0
    %p106 = por %p104, %p105
    %s107 = ssub.s32 %s17, %s29
    %s108 = ssub.s32 %s18, %s25
    %s109 = sor.u32 %s107, %s108
    %p110 = scmp.eq.s32.totalorder %s109, 0
    %s112 = sadd.s32 %s111, 1
    %s113 = scalar_select %p110, %s111, %s112
    %p116 = pneg %p110
    %p117 = scmp.eq.s32.totalorder %s10, 1
    %p118 = por %p116, %p117
    %p119 = scmp.ne.s32.totalorder %s111, %s114
    %p120 = scmp.eq.s32.totalorder %s10, 0
    %p121 = por %p119, %p120
    %p122 = scmp.ne.s32.totalorder %s111, %s114
    %p123 = scmp.eq.s32.totalorder %s15, 1
    %p124 = por %p122, %p123
    %p125 = scmp.ne.s32.totalorder %s114, %s115
    %p126 = scmp.eq.s32.totalorder %s15, 0
    %p127 = por %p125, %p126
    %p128 = scmp.ne.s32.totalorder %s114, %s115
    %p129 = scmp.eq.s32.totalorder %s16, 1
    %p130 = por %p128, %p129
    %p132 = scmp.ne.s32.totalorder %s115, %s131
    %p133 = scmp.eq.s32.totalorder %s16, 0
    %p134 = por %p132, %p133
    %p135 = scmp.le.s32.totalorder 1, %s10
    %p136 = scmp.lt.s32.totalorder %s10, 3
    %p137 = pnand %p135, %p136
    %p138 = pneg %p137
    // Predicated region
    $region9: #{tpu_custom_call.1} parent=5 // pred_check
      _
    $region10: #{tpu_custom_call.1} parent=5 // pred_check_branch
      %140 = sbr.rel (%p137) target = $region12
    $region11: #{tpu_custom_call.1} parent=5 // pred_region
      %s141 = ssub.s32 %s10, 1
      // Predicated region
      $region13: #{tpu_custom_call.1} parent=11 // pred_check
        %p142 = pneg %p43
      $region14: #{tpu_custom_call.1} parent=11 // pred_check_branch
        %144 = sbr.rel (%p142) target = $region16
      $region15: #{tpu_custom_call.1} parent=11 // pred_region
        _
      $region16: #{tpu_custom_call.1} parent=11 // pred_fallthru
        _
    $region12: #{tpu_custom_call.1} parent=5 // pred_fallthru
      _
    %p145 = scmp.lt.s32.totalorder %s10, 2
    // Predicated region
    $region17: #{tpu_custom_call.1} parent=5 // pred_check
      %p146 = pneg %p145
    $region18: #{tpu_custom_call.1} parent=5 // pred_check_branch
      %148 = sbr.rel (%p146) target = $region20
    $region19: #{tpu_custom_call.1} parent=5 // pred_region
      // Predicated region
      $region21: #{tpu_custom_call.1} parent=19 // pred_check
        %p149 = pneg %p65
      $region22: #{tpu_custom_call.1} parent=19 // pred_check_branch
        %151 = sbr.rel (%p149) target = $region24
      $region23: #{tpu_custom_call.1} parent=19 // pred_region
        %p152 = scmp.lt.s32.totalorder %s17, 1
        %s153 = scalar_select %p152, %s17, 1
        %p154 = scmp.lt.s32.totalorder %s18, 0
        %s155 = scalar_select %p154, %s18, 0
        %s156 = smul.addr %s153, 2
        %s157 = sadd.s32 %s155, %s156
        %s158 = smul.addr %s157, 8
        %s159 = scalar_lea.vmem %s1, %s158
      $region24: #{tpu_custom_call.1} parent=19 // pred_fallthru
        _
    $region20: #{tpu_custom_call.1} parent=5 // pred_fallthru
      _
    %p160 = scmp.le.s32.totalorder 1, %s10
    %p161 = scmp.lt.s32.totalorder %s10, 3
    %p162 = pnand %p160, %p161
    %p163 = pneg %p162
    // Predicated region
    $region25: #{tpu_custom_call.1} parent=5 // pred_check
      _
    $region26: #{tpu_custom_call.1} parent=5 // pred_check_branch
      %165 = sbr.rel (%p162) target = $region28
    $region27: #{tpu_custom_call.1} parent=5 // pred_region
      %s166 = ssub.s32 %s10, 1
      %p167 = pneg %p43
      %p168 = pneg %p40
      %p169 = scmp.lt.s32.totalorder %s19, 1
      %s170 = scalar_select %p169, %s19, 1
      %p171 = scmp.lt.s32.totalorder %s20, 0
      %s172 = scalar_select %p171, %s20, 0
      %s173 = smul.addr %s170, 2
      %s174 = sadd.s32 %s172, %s173
      %s175 = smul.addr %s174, 8
      %s176 = scalar_lea.vmem %s1, %s175
      %p177 = pneg %p71
      %p178 = pneg %p68
      %p179 = pneg %p99
      %p180 = pneg %p96
      %p181 = scmp.lt.s32.totalorder %s19, 1
      %s182 = scalar_select %p181, %s19, 1
      %p183 = scmp.lt.s32.totalorder %s20, 0
      %s184 = scalar_select %p183, %s20, 0
      %s185 = smul.addr %s182, 2
      %s186 = sadd.s32 %s184, %s185
      %s187 = smul.addr %s186, 8
      %s188 = scalar_lea.vmem %s2, %s187
      %p189 = pneg %p127
      %p190 = pneg %p124
      %p191 = scmp.lt.s32.totalorder %s19, 1
      %s192 = scalar_select %p191, %s19, 1
      %p193 = scmp.lt.s32.totalorder %s20, 0
      %s194 = scalar_select %p193, %s20, 0
      %s195 = smul.addr %s192, 2
      %s196 = sadd.s32 %s194, %s195
      %s197 = smul.addr %s196, 8
      %s198 = scalar_lea.vmem %s3, %s197
      %p199 = scmp.lt.s32.totalorder %s19, 1
      %s200 = scalar_select %p199, %s19, 1
      %p201 = scmp.lt.s32.totalorder %s20, 0
      %s202 = scalar_select %p201, %s20, 0
      %s203 = smul.addr %s200, 2
      %s204 = sadd.s32 %s202, %s203
      %s205 = smul.addr %s204, 8
      %s206 = scalar_lea.vmem %s1, %s205
      %p207 = scmp.lt.s32.totalorder %s19, 1
      %s208 = scalar_select %p207, %s19, 1
      %p209 = scmp.lt.s32.totalorder %s20, 0
      %s210 = scalar_select %p209, %s20, 0
      %s211 = smul.addr %s208, 2
      %s212 = sadd.s32 %s210, %s211
      %s213 = smul.addr %s212, 8
      %s214 = scalar_lea.vmem %s2, %s213
      %p215 = scmp.lt.s32.totalorder %s19, 1
      %s216 = scalar_select %p215, %s19, 1
      %p217 = scmp.lt.s32.totalorder %s20, 0
      %s218 = scalar_select %p217, %s20, 0
      %s219 = smul.addr %s216, 2
      %s220 = sadd.s32 %s218, %s219
      %s221 = smul.addr %s220, 8
      %s222 = scalar_lea.vmem %s3, %s221
      %v223 = vld [vmem:[%s0] sm:$0xff]
      %v224 = vld [vmem:[%s0 + $0x8] sm:$0xff]
      %v225 = vld [vmem:[%s206] sm:$0xff]
      %v226 = vld [vmem:[%s206 + $0x8] sm:$0xff]
      %vm227 = vcmask 130048
      %v229 = vsel %vm227, %v223, 0
      %v232 = vsel %vm227, %v224, 0
      %234 = vmatpush.msra.mxu0 0.0
      %235 = vmatpush.msra.mxu0 0.0
      %236 = vmatpush.msra.mxu0 0.0
      %237 = vmatpush.msra.mxu0 0.0
      %238 = vmatpush.msra.mxu0 0.0
      %239 = vmatpush.msra.mxu0 0.0
      %240 = vmatpush.msra.mxu0 0.0
      %241 = vmatpush.msra.mxu0 0.0
      %242 = vmatpush.msra.mxu0 0.0
      %243 = vmatpush.msra.mxu0 0.0
      %244 = vmatpush.msra.mxu0 0.0
      %245 = vmatpush.msra.mxu0 0.0
      %246 = vmatpush.msra.mxu0 0.0
      %247 = vmatpush.msra.mxu0 0.0
      %248 = vmatpush.msra.mxu0 %v226
      %249 = vmatpush.msra.mxu0 %v225
      %250 = vmatmul.f32.gmra.mxu0 %v229
      %v251 = vpop.f32.mrf.mxu0
      %v252 = vadd.f32 0.0, %v251
      %253 = vmatmul.f32.gmra.mxu0 %v232
      %v254 = vpop.f32.mrf.mxu0
      %v255 = vadd.f32 0.0, %v254
      %256 = vdwg.mxu0
      %vm257 = vcmask 31744
      %258 = vst.msk [vmem:[%s222] sm:$0xff] %vm257, %v252
      %259 = vst.msk [vmem:[%s222 + $0x8] sm:$0xff] %vm257, %v255
      %v260 = vsub.f32 %v225, %v252
      %v261 = vsub.f32 %v226, %v255
      %262 = vst.msk [vmem:[%s214] sm:$0xff] %vm257, %v260
      %263 = vst.msk [vmem:[%s214 + $0x8] sm:$0xff] %vm257, %v261
      %p264 = scmp.lt.s32.totalorder %s19, 1
      %s265 = scalar_select %p264, %s19, 1
      %p266 = scmp.lt.s32.totalorder %s20, 0
      %s267 = scalar_select %p266, %s20, 0
      %s268 = smul.addr %s265, 2
      %s269 = sadd.s32 %s267, %s268
      %s270 = smul.addr %s269, 8
      %s271 = scalar_lea.vmem %s2, %s270
      %p272 = scmp.lt.s32.totalorder %s19, 1
      %s273 = scalar_select %p272, %s19, 1
      %p274 = scmp.lt.s32.totalorder %s20, 0
      %s275 = scalar_select %p274, %s20, 0
      %s276 = smul.addr %s273, 2
      %s277 = sadd.s32 %s275, %s276
      %s278 = smul.addr %s277, 8
      %s279 = scalar_lea.vmem %s3, %s278
      // Predicated region
      $region29: #{tpu_custom_call.1} parent=27 // pred_check
        %p280 = pneg %p96
      $region30: #{tpu_custom_call.1} parent=27 // pred_check_branch
        %282 = sbr.rel (%p280) target = $region32
      $region31: #{tpu_custom_call.1} parent=27 // pred_region
        _
      $region32: #{tpu_custom_call.1} parent=27 // pred_fallthru
        _
      // Predicated region
      $region33: #{tpu_custom_call.1} parent=27 // pred_check
        %p283 = pneg %p124
      $region34: #{tpu_custom_call.1} parent=27 // pred_check_branch
        %285 = sbr.rel (%p283) target = $region36
      $region35: #{tpu_custom_call.1} parent=27 // pred_region
        _
      $region36: #{tpu_custom_call.1} parent=27 // pred_fallthru
        _
    $region28: #{tpu_custom_call.1} parent=5 // pred_fallthru
      _
    %p286 = scmp.le.s32.totalorder 2, %s10
    // Predicated region
    $region37: #{tpu_custom_call.1} parent=5 // pred_check
      %p287 = pneg %p286
    $region38: #{tpu_custom_call.1} parent=5 // pred_check_branch
      %289 = sbr.rel (%p287) target = $region40
    $region39: #{tpu_custom_call.1} parent=5 // pred_region
      %s290 = ssub.s32 %s10, 2
      // Predicated region
      $region41: #{tpu_custom_call.1} parent=39 // pred_check
        %p291 = pneg %p102
      $region42: #{tpu_custom_call.1} parent=39 // pred_check_branch
        %293 = sbr.rel (%p291) target = $region44
      $region43: #{tpu_custom_call.1} parent=39 // pred_region
        %p294 = scmp.lt.s32.totalorder %s21, 1
        %s295 = scalar_select %p294, %s21, 1
        %p296 = scmp.lt.s32.totalorder %s22, 0
        %s297 = scalar_select %p296, %s22, 0
        %s298 = smul.addr %s295, 2
        %s299 = sadd.s32 %s297, %s298
        %s300 = smul.addr %s299, 8
        %s301 = scalar_lea.vmem %s2, %s300
      $region44: #{tpu_custom_call.1} parent=39 // pred_fallthru
        _
      // Predicated region
      $region45: #{tpu_custom_call.1} parent=39 // pred_check
        %p302 = pneg %p130
      $region46: #{tpu_custom_call.1} parent=39 // pred_check_branch
        %304 = sbr.rel (%p302) target = $region48
      $region47: #{tpu_custom_call.1} parent=39 // pred_region
        %p305 = scmp.lt.s32.totalorder %s21, 1
        %s306 = scalar_select %p305, %s21, 1
        %p307 = scmp.lt.s32.totalorder %s22, 0
        %s308 = scalar_select %p307, %s22, 0
        %s309 = smul.addr %s306, 2
        %s310 = sadd.s32 %s308, %s309
        %s311 = smul.addr %s310, 8
        %s312 = scalar_lea.vmem %s3, %s311
      $region48: #{tpu_custom_call.1} parent=39 // pred_fallthru
        _
    $region40: #{tpu_custom_call.1} parent=5 // pred_fallthru
      _
  $region6: #{tpu_custom_call.1} parent=0 // loop_footer
    %s14 = sadd.s32 1, %s10
  $region7: #{tpu_custom_call.1} parent=0 // loop_footer_branch
    %9 = sbr.rel target = $region3
  $region8: #{tpu_custom_call.1} parent=0 // loop_exit
    _

</llo_original>
